<compile_context>
chip_gen: v7x
topology: tpu7x:2x2x1
jax: 0.10.0
libtpu: 0.0.40
codegen_flags: <defaults>
</compile_context>

<pallas_src>
import math

import jax
import jax.numpy as jnp
from jax.experimental import pallas as pl
from jax.experimental.pallas import tpu as pltpu


# --------------------------------------------------------------------------- #
# chip-aware budgets
# --------------------------------------------------------------------------- #
def _chip_budgets():
    """(vmem_limit_bytes, per-block byte budget), scaled to the chip's VMEM."""
    vmem_cap = 64 << 20                                    # conservative default
    try:
        info = pltpu.get_tpu_info()
        vmem_cap = int(getattr(info, "vmem_capacity_bytes", vmem_cap))
    except Exception:
        pass
    vmem_limit = max(16 << 20, (vmem_cap * 3) // 4)        # 48 MiB v7x, 96 MiB v5e/v6e
    block_budget = max(1 << 20, min(vmem_limit // 8, 16 << 20))
    return vmem_limit, block_budget


# --------------------------------------------------------------------------- #
# tile pickers (budget-enforced on every path)
# --------------------------------------------------------------------------- #
def _ct_candidates(C):
    """Legal channel tiles for (.., ct, S) blocks: multiples of 8 dividing C, or C."""
    return sorted({C} | {c for c in range(8, C, 8) if C % c == 0}, reverse=True)


def _lane_group_candidates(C, S):
    """Channel-group sizes cg dividing C with cg*S a multiple of 128, plus full C."""
    step = 128 // math.gcd(S, 128)
    return sorted({C} | {c for c in range(step, C, step) if C % c == 0}, reverse=True)


def _bt_candidates(B, multiple=1, sublane=False):
    """Legal batch tiles (divisors of B).  `multiple`: chunk-grouping constraint.
    `sublane`: tile lands in a block's second-last dim -> 8-aligned or == B."""
    out = []
    for b in range(B, 0, -1):
        if B % b or b % multiple:
            continue
        if sublane and b != B and b % 8:
            continue
        out.append(b)
    return out or [B]


def _pick_tiles(B, C, lane_elems, ct_cands, bt_cands, budget_bytes, *,
                elem_bytes=4, split_bt=True):
    """Largest (bt, ct) block under the byte budget (budgeted at f32 width so the
    in-kernel up-cast fits), then force >= 2 grid steps when possible so both
    v7x TensorCores get work."""
    best = None
    for ct in ct_cands:
        for bt in bt_cands:
            if bt * ct * lane_elems * elem_bytes <= budget_bytes:
                if best is None or bt * ct > best[0] * best[1]:
                    best = (bt, ct)
    if best is None:
        # Nothing fits -> smallest legal block (still far better than full-extent).
        # TODO(synk): add a spatial grid axis for shapes whose minimal legal
        # (bt, ct, S) block still exceeds the VMEM budget.
        best = (bt_cands[-1], ct_cands[-1])
    bt, ct = best
    if (B // bt) * (C // ct) == 1:
        smaller_ct = [c for c in ct_cands if c < ct]
        if smaller_ct:
            ct = smaller_ct[0]
        elif split_bt:
            smaller_bt = [b for b in bt_cands if b < bt]
            if smaller_bt:
                bt = smaller_bt[0]
    return bt, ct


# --------------------------------------------------------------------------- #
# kernels
# --------------------------------------------------------------------------- #
def _sample_minmax_kernel(x_ref, smin_ref, smax_ref):
    """Pass A: spatial min/max per (sample, channel) tile.  Both grid axes write
    distinct output blocks -> fully parallel (megacore friendly)."""
    x = x_ref[...].astype(jnp.float32)                     # (bt, ct, S)
    smin_ref[...] = jnp.min(x, axis=2, keepdims=True)      # (bt, ct, 1)
    smax_ref[...] = jnp.max(x, axis=2, keepdims=True)


def _make_channel_stats_kernel(bt, ct, S, L):
    """Pass B: per-channel sums of quantize(x), chunk-max and chunk-min sums,
    accumulated over batch tiles (last, 'arbitrary' grid axis)."""
    if S % L == 0:
        cps = S // L                                        # chunks per sample

        def chunk_sums(q):                                  # q: (bt, ct, S) f32
            qr = q.reshape(bt, ct, cps, L)
            cmax = jnp.sum(jnp.sum(jnp.max(qr, axis=-1, keepdims=True),
                                   axis=2), axis=0)         # (ct, 1)
            cmin = jnp.sum(jnp.sum(jnp.min(qr, axis=-1, keepdims=True),
                                   axis=2), axis=0)
            return cmax, cmin
    else:                                                   # L % S == 0
        P = L // S                                          # samples per chunk
        nb = bt // P                                        # whole chunks per tile

        def chunk_sums(q):
            qr = q.reshape(nb, P, ct, S)
            cmax = jnp.sum(jnp.max(jnp.max(qr, axis=-1, keepdims=True),
                                   axis=1), axis=0)         # (ct, 1)
            cmin = jnp.sum(jnp.min(jnp.min(qr, axis=-1, keepdims=True),
                                   axis=1), axis=0)
            return cmax, cmin

    def kernel(qp_ref, x_ref, sum_ref, smax_ref, smin_ref):
        mn, sc, inv, qmax = qp_ref[0], qp_ref[1], qp_ref[2], qp_ref[3]
        x = x_ref[...].astype(jnp.float32)                  # (bt, ct, S)
        # UniformQuantize (enforce_true_zero=False, stochastic=False); the divide
        # is hoisted to a reciprocal multiply computed once in the wrapper.
        q = jnp.round(jnp.clip((x - mn) * inv, 0.0, qmax)) * sc + mn
        psum = jnp.sum(jnp.sum(q, axis=2, keepdims=True), axis=0)       # (ct, 1)
        pmax, pmin = chunk_sums(q)

        bi = pl.program_id(1)

        @pl.when(bi == 0)
        def _():
            sum_ref[...] = psum
            smax_ref[...] = pmax
            smin_ref[...] = pmin

        @pl.when(bi > 0)
        def _():
            sum_ref[...] = sum_ref[...] + psum
            smax_ref[...] = smax_ref[...] + pmax
            smin_ref[...] = smin_ref[...] + pmin

    return kernel


def _quant_affine_kernel(qp_ref, x_ref, g_ref, b_ref, o_ref):
    """Pass C: out = round(clip((x-mn)*inv, 0, qmax)) * gamma' + beta'.
    gamma' = scale_in * qscale * qweight,  beta' = (mn - mean) * qscale*qweight + qbias
    (dequant affine folded into the per-channel constants).  Works for both the
    3-D (bt, ct, S) and lane-dense 2-D (bt, cg*S) block layouts via broadcasting."""
    mn, inv, qmax = qp_ref[0], qp_ref[2], qp_ref[3]
    x = x_ref[...].astype(jnp.float32)
    q = jnp.round(jnp.clip((x - mn) * inv, 0.0, qmax))
    o_ref[...] = (q * g_ref[...] + b_ref[...]).astype(o_ref.dtype)


# --------------------------------------------------------------------------- #
# small JAX glue (C-length vectors / scalars only)
# --------------------------------------------------------------------------- #
def _quantize_vec(v, num_bits=8, min_value=None, max_value=None):
    """UniformQuantize on tiny per-channel vectors (scale / weight / bias)."""
    if min_value is None:
        min_value = jnp.min(v)
    if max_value is None:
        max_value = jnp.max(v)
    qmax = 2.0 ** num_bits - 1.0
    scale = jnp.maximum((max_value - min_value) / qmax, 1e-8)
    return jnp.round(jnp.clip((v - min_value) / scale, 0.0, qmax)) * scale + min_value


# --------------------------------------------------------------------------- #
# forward
# --------------------------------------------------------------------------- #
def range_bn_forward(x, weight, bias, running_mean, running_var,
                     running_min=None, running_max=None, *,
                     num_chunks=16, eps=1e-5, momentum=0.1, num_bits=8):
    B, C, H, W = x.shape
    S = H * W
    N = B * S
    assert N % num_chunks == 0, "B*H*W must be divisible by num_chunks"
    K = num_chunks
    L = N // K
    # TODO(synk): chunks that straddle sample boundaries at non-sample multiples
    # (neither S % L == 0 nor L % S == 0) are not supported.
    assert S % L == 0 or L % S == 0, \
        "chunk length must subdivide a sample or group whole samples"
    qmax = 2.0 ** num_bits - 1.0

    if running_min is None:
        running_min = jnp.zeros((1,), jnp.float32)
    if running_max is None:
        running_max = jnp.zeros((1,), jnp.float32)

    vmem_limit, block_budget = _chip_budgets()

    def cparams(sem):
        return pltpu.CompilerParams(dimension_semantics=sem,
                                    vmem_limit_bytes=vmem_limit)

    smem_spec = pl.BlockSpec(memory_space=pltpu.MemorySpace.SMEM)

    x3 = x.reshape(B, C, S)                      # free NCHW view, native dtype

    # ---- pass A: QuantMeasure per-sample min / max (tiny per-tile partials) ----
    bt_a, ct_a = _pick_tiles(B, C, S, _ct_candidates(C), _bt_candidates(B),
                             block_budget)
    n_ct_a, n_bt_a = C // ct_a, B // bt_a

    smin_p, smax_p = pl.pallas_call(
        _sample_minmax_kernel,
        out_shape=(jax.ShapeDtypeStruct((B, C, 1), jnp.float32),
                   jax.ShapeDtypeStruct((B, C, 1), jnp.float32)),
        grid=(n_ct_a, n_bt_a),
        in_specs=[pl.BlockSpec((bt_a, ct_a, S), lambda ci, bi: (bi, ci, 0))],
        out_specs=(pl.BlockSpec((bt_a, ct_a, 1), lambda ci, bi: (bi, ci, 0)),
                   pl.BlockSpec((bt_a, ct_a, 1), lambda ci, bi: (bi, ci, 0))),
        compiler_params=cparams(("parallel", "parallel")),
    )(x3)

    mn = jnp.mean(jnp.min(smin_p[:, :, 0], axis=1))        # mean of per-sample min
    mx = jnp.mean(jnp.max(smax_p[:, :, 0], axis=1))
    scale_in = jnp.maximum((mx - mn) / qmax, 1e-8)
    qparams = jnp.stack([mn, scale_in, 1.0 / scale_in,
                         jnp.float32(qmax)]).astype(jnp.float32)   # (4,) -> SMEM

    # ---- pass B: per-channel stats of the quantized input ---------------------
    bt_mult = 1 if S % L == 0 else L // S        # keep whole chunks per batch tile
    bt_b, ct_b = _pick_tiles(B, C, S, _ct_candidates(C),
                             _bt_candidates(B, multiple=bt_mult),
                             block_budget, split_bt=False)
    n_ct_b, n_bt_b = C // ct_b, B // bt_b

    q_sum, q_maxsum, q_minsum = pl.pallas_call(
        _make_channel_stats_kernel(bt_b, ct_b, S, L),
        out_shape=(jax.ShapeDtypeStruct((C, 1), jnp.float32),) * 3,
        grid=(n_ct_b, n_bt_b),                   # reduction (batch) axis last
        in_specs=[smem_spec,
                  pl.BlockSpec((bt_b, ct_b, S), lambda ci, bi: (bi, ci, 0))],
        out_specs=(pl.BlockSpec((ct_b, 1), lambda ci, bi: (ci, 0)),) * 3,
        compiler_params=cparams(("parallel", "arbitrary")),
    )(qparams, x3)

    # ---- tiny per-channel glue (plain JAX on C-length vectors) ---------------
    ch_mean = q_sum[:, 0] / float(N)
    mean_max = q_maxsum[:, 0] / float(K)
    mean_min = q_minsum[:, 0] / float(K)

    scale_fix = (0.5 * 0.35 * (1 + (math.pi * math.log(4)) ** 0.5)
                 / (2 * math.log(L)) ** 0.5)
    scale = 1.0 / ((mean_max - mean_min) * scale_fix + eps)            # (C,)

    new_running_mean = running_mean * momentum + ch_mean * (1.0 - momentum)
    new_running_var = running_var * momentum + scale * (1.0 - momentum)
    new_running_min = running_min * momentum + mn * (1.0 - momentum)
    new_running_max = running_max * momentum + mx * (1.0 - momentum)

    qscale = _quantize_vec(scale, num_bits)
    qweight = _quantize_vec(weight, num_bits)
    qbias = _quantize_vec(bias, num_bits)
    g = qscale * qweight                                               # (C,)
    # out = (qx - mean) * g + qbias, qx = r*scale_in + mn, r = round(clip(...))
    #     = r * (scale_in*g) + (mn - mean)*g + qbias
    gamma2 = (scale_in * g).astype(jnp.float32)
    beta2 = ((mn - ch_mean) * g + qbias).astype(jnp.float32)

    # ---- pass C: quantize + normalize + affine, written in the input dtype ----
    out_dtype = x.dtype
    if S % 128 == 0:
        # spatial axis already lane-dense -> keep the 3-D NCHW view
        bt_c, ct_c = _pick_tiles(B, C, S, _ct_candidates(C), _bt_candidates(B),
                                 block_budget)
        n_ct_c, n_bt_c = C // ct_c, B // bt_c
        out3 = pl.pallas_call(
            _quant_affine_kernel,
            out_shape=jax.ShapeDtypeStruct((B, C, S), out_dtype),
            grid=(n_ct_c, n_bt_c),
            in_specs=[smem_spec,
                      pl.BlockSpec((bt_c, ct_c, S), lambda ci, bi: (bi, ci, 0)),
                      pl.BlockSpec((ct_c, 1), lambda ci, bi: (ci, 0)),
                      pl.BlockSpec((ct_c, 1), lambda ci, bi: (ci, 0))],
            out_specs=pl.BlockSpec((bt_c, ct_c, S), lambda ci, bi: (bi, ci, 0)),
            compiler_params=cparams(("parallel", "parallel")),
        )(qparams, x3, gamma2.reshape(C, 1), beta2.reshape(C, 1))
        out = out3.reshape(B, C, H, W)
    else:
        # small-spatial stage: lane-dense (B, C*S) view (contiguous NCHW view),
        # gamma/beta pre-expanded to length C*S in the glue.
        CS = C * S
        x2 = x.reshape(B, CS)
        bt_c, cg = _pick_tiles(B, C, S, _lane_group_candidates(C, S),
                               _bt_candidates(B, sublane=True), block_budget)
        n_cg, n_bt_c = C // cg, B // bt_c
        g_exp = jnp.repeat(gamma2, S).reshape(1, CS)
        b_exp = jnp.repeat(beta2, S).reshape(1, CS)
        out2 = pl.pallas_call(
            _quant_affine_kernel,
            out_shape=jax.ShapeDtypeStruct((B, CS), out_dtype),
            grid=(n_cg, n_bt_c),
            in_specs=[smem_spec,
                      pl.BlockSpec((bt_c, cg * S), lambda gi, bi: (bi, gi)),
                      pl.BlockSpec((1, cg * S), lambda gi, bi: (0, gi)),
                      pl.BlockSpec((1, cg * S), lambda gi, bi: (0, gi))],
            out_specs=pl.BlockSpec((bt_c, cg * S), lambda gi, bi: (bi, gi)),
            compiler_params=cparams(("parallel", "parallel")),
        )(qparams, x2, g_exp, b_exp)
        out = out2.reshape(B, C, H, W)

    # quantize_grad(num_bits_grad) only affects the backward pass; forward is identity.
    return (out, new_running_mean, new_running_var,
            new_running_min, new_running_max)


# --------------------------------------------------------------------------- #
# pure-JAX reference (test-only, mirrors the PyTorch forward)
# --------------------------------------------------------------------------- #
def _reference_forward(x, weight, bias, running_mean, running_var,
                       running_min, running_max, *,
                       num_chunks=16, eps=1e-5, momentum=0.1, num_bits=8):
    x = x.astype(jnp.float32)
    B, C, H, W = x.shape
    qmax = 2.0 ** num_bits - 1.0
    xb = x.reshape(B, -1)
    mn = jnp.mean(jnp.min(xb, axis=1))
    mx = jnp.mean(jnp.max(xb, axis=1))
    scale_in = jnp.maximum((mx - mn) / qmax, 1e-8)
    qx = jnp.round(jnp.clip((x - mn) / scale_in, 0.0, qmax)) * scale_in + mn

    y = jnp.transpose(qx, (1, 0, 2, 3)).reshape(C, num_chunks, -1)
    mean_max = jnp.mean(jnp.max(y, axis=-1), axis=-1)
    mean_min = jnp.mean(jnp.min(y, axis=-1), axis=-1)
    mean = jnp.mean(y.reshape(C, -1), axis=-1)
    L = y.shape[-1]
    scale_fix = (0.5 * 0.35 * (1 + (math.pi * math.log(4)) ** 0.5)
                 / (2 * math.log(L)) ** 0.5)
    scale = 1.0 / ((mean_max - mean_min) * scale_fix + eps)

    new_rm = running_mean * momentum + mean * (1.0 - momentum)
    new_rv = running_var * momentum + scale * (1.0 - momentum)
    new_rmin = running_min * momentum + mn * (1.0 - momentum)
    new_rmax = running_max * momentum + mx * (1.0 - momentum)

    qscale = _quantize_vec(scale, num_bits)
    qweight = _quantize_vec(weight, num_bits)
    qbias = _quantize_vec(bias, num_bits)
    out = (qx - mean.reshape(1, C, 1, 1)) * qscale.reshape(1, C, 1, 1)
    out = out * qweight.reshape(1, C, 1, 1) + qbias.reshape(1, C, 1, 1)
    return out, new_rm, new_rv, new_rmin, new_rmax


if __name__ == "__main__":
    key = jax.random.PRNGKey(0)

    # (B, C, H, W, num_chunks) — exercise all three code paths:
    #   1) S a multiple of 128, chunks subdivide samples   (3-D pass C)
    #   2) S not a multiple of 128                          (lane-dense 2-D pass C)
    #   3) chunks group whole samples (L % S == 0 branch of pass B)
    cases = [
        (2, 4, 16, 16, 16),
        (2, 8, 8, 8, 16),
        (4, 8, 16, 16, 2),
    ]
    for idx, (B, C, H, W, K) in enumerate(cases):
        kx, kw, key = jax.random.split(key, 3)
        x = jax.random.normal(kx, (B, C, H, W), dtype=jnp.float32)

        # RangeBN.reset_params: weight ~ U[0,1), bias = 0, running buffers zero.
        weight = jax.random.uniform(kw, (C,), dtype=jnp.float32)
        bias = jnp.zeros((C,), dtype=jnp.float32)
        running_mean = jnp.zeros((C,), dtype=jnp.float32)
        running_var = jnp.zeros((C,), dtype=jnp.float32)
        running_min = jnp.zeros((1,), dtype=jnp.float32)
        running_max = jnp.zeros((1,), dtype=jnp.float32)

        out, rm, rv, rmin, rmax = range_bn_forward(
            x, weight, bias, running_mean, running_var, running_min, running_max,
            num_chunks=K, eps=1e-5, momentum=0.1, num_bits=8)
        jax.block_until_ready(out)
        assert out.shape == (B, C, H, W)

        ref = _reference_forward(
            x, weight, bias, running_mean, running_var, running_min, running_max,
            num_chunks=K, eps=1e-5, momentum=0.1, num_bits=8)
        # Tolerances are deliberately loose: the reciprocal-multiply quantization
        # and folded affine can flip rare ULP-level round-to-nearest decisions vs
        # the divide-based reference; structural bugs would be O(1) errors.
        assert float(jnp.max(jnp.abs(out - ref[0]))) < 0.1, f"case {idx}: out"
        assert float(jnp.max(jnp.abs(rm - ref[1]))) < 1e-2, f"case {idx}: running_mean"
        assert float(jnp.max(jnp.abs(rv - ref[2]))) < 1e-2, f"case {idx}: running_var"
        assert float(jnp.max(jnp.abs(rmin - ref[3]))) < 1e-3, f"case {idx}: running_min"
        assert float(jnp.max(jnp.abs(rmax - ref[4]))) < 1e-3, f"case {idx}: running_max"

    print("KERNEL_OK")
</pallas_src>

<mosaic_0001>
module attributes {stable_mosaic.version = 11 : i64} {
  func.func @_sample_minmax_kernel(%arg0: i32, %arg1: i32, %arg2: memref<1x4x256xf32, #tpu.memory_space<vmem>>, %arg3: memref<1x4x1xf32, #tpu.memory_space<vmem>>, %arg4: memref<1x4x1xf32, #tpu.memory_space<vmem>>) attributes {dimension_semantics = [#tpu.dimension_semantics<parallel>, #tpu.dimension_semantics<parallel>], iteration_bounds = array<i64: 1, 2>, scalar_prefetch = 0 : i64, scratch_operands = 0 : i64, tpu.core_type = #tpu.core_type<tc>, window_params = [{transform_indices = @transform_0, window_bounds = array<i64: 1, 4, 256>}, {transform_indices = @transform_1, window_bounds = array<i64: 1, 4, 1>}, {transform_indices = @transform_2, window_bounds = array<i64: 1, 4, 1>}]} {
    %c0 = arith.constant 0 : index
    %c0_0 = arith.constant 0 : index
    %c0_1 = arith.constant 0 : index
    %0 = vector.load %arg2[%c0, %c0_0, %c0_1] : memref<1x4x256xf32, #tpu.memory_space<vmem>>, vector<1x4x256xf32>
    %cst = arith.constant dense<0x7F800000> : vector<1x4xf32>
    %1 = vector.multi_reduction <minimumf>, %0, %cst [2] : vector<1x4x256xf32> to vector<1x4xf32>
    %2 = vector.shape_cast %1 : vector<1x4xf32> to vector<1x4x1xf32>
    %c0_2 = arith.constant 0 : index
    %c0_3 = arith.constant 0 : index
    %c0_4 = arith.constant 0 : index
    %3 = vector.load %arg3[%c0_2, %c0_3, %c0_4] : memref<1x4x1xf32, #tpu.memory_space<vmem>>, vector<1x4x1xf32>
    tpu.vector_store %arg3[%c0_2, %c0_3, %c0_4], %2 {strides = array<i32>} : memref<1x4x1xf32, #tpu.memory_space<vmem>>, vector<1x4x1xf32>,
    %cst_5 = arith.constant dense<0xFF800000> : vector<1x4xf32>
    %4 = vector.multi_reduction <maximumf>, %0, %cst_5 [2] : vector<1x4x256xf32> to vector<1x4xf32>
    %5 = vector.shape_cast %4 : vector<1x4xf32> to vector<1x4x1xf32>
    %c0_6 = arith.constant 0 : index
    %c0_7 = arith.constant 0 : index
    %c0_8 = arith.constant 0 : index
    %6 = vector.load %arg4[%c0_6, %c0_7, %c0_8] : memref<1x4x1xf32, #tpu.memory_space<vmem>>, vector<1x4x1xf32>
    tpu.vector_store %arg4[%c0_6, %c0_7, %c0_8], %5 {strides = array<i32>} : memref<1x4x1xf32, #tpu.memory_space<vmem>>, vector<1x4x1xf32>,
    return
  }
  func.func @transform_0(%arg0: i32, %arg1: i32) -> (i32, i32, i32) {
    %c0_i32 = arith.constant 0 : i32
    %c0_i32_0 = arith.constant 0 : i32
    return %arg1, %arg0, %c0_i32 : i32, i32, i32
  }
  func.func @transform_1(%arg0: i32, %arg1: i32) -> (i32, i32, i32) {
    %c0_i32 = arith.constant 0 : i32
    %c0_i32_0 = arith.constant 0 : i32
    return %arg1, %arg0, %c0_i32 : i32, i32, i32
  }
  func.func @transform_2(%arg0: i32, %arg1: i32) -> (i32, i32, i32) {
    %c0_i32 = arith.constant 0 : i32
    %c0_i32_0 = arith.constant 0 : i32
    return %arg1, %arg0, %c0_i32 : i32, i32, i32
  }
}

</mosaic_0001>

<llo_original>
// kernel: tpu_custom_call.1
$region0: #{tpu_custom_call.1}
  #allocation0 [shape = 'u32[]', space=smem, size = 0x4, offset = 0x4, fixed_abs, tag = 'smem constant byte address 0x4 - core index']
  #allocation1 [shape = 'u32[144,128]{1,0:T(1,128)}', space=vmem, size = 0x12000, scoped, tag = 'internal scratch']
  %s0 = inlined_call_operand.hbm [shape: f32[2,4,256], index: 0, kind: input, shape index: {}]
  %s1 = inlined_call_operand.vmem [shape: f32[2,4,1], index: 1, kind: output, shape index: {0}]
  %s2 = inlined_call_operand.vmem [shape: f32[2,4,1], index: 2, kind: output, shape index: {1}]
  %3 = xla_tuple %s1, %s2
  %s4 = sld [smem:[#allocation0]]
  $region49: #{tpu_custom_call.1} parent=0
    _
  %s6 = ssub.s32 1, %s4
  %s7 = scalar_select 0, %s6, %s4
  $region1: #{tpu_custom_call.1} parent=0
    #allocation2 [shape = 'u8[8192]{0}', space=vmem, size = 0x2000, scoped, tag = 'input window, operand 0']
    #allocation3 [shape = 's32[2]{0}', space=sflag, size = 0x8, scoped, tag = 'scoped memory for tpu_custom_call.1']
    %8 = vsyncpa [#allocation3], 0
    %s9 = scalar_lea.sflag [#allocation3], 1
    %10 = vsyncpa %s9, 0
    loop: start=0, step=1, limit=4
    $region2: #{tpu_custom_call.1} parent=1 // loop_pre_header
      _
    $region3: #{tpu_custom_call.1} parent=1 // loop_header
      %s12 = sphi 0, %s16
      %p13 = scmp.ge.s32.totalorder %s12, 4
      %s19 = sphi 0, %s31
      %s20 = sphi 0, %s27
      %s21 = sphi 0, %s19
      %s22 = sphi 0, %s20
      %s23 = sphi 0, %s21
      %s24 = sphi 0, %s22
      %s36 = sphi 0, %s38
      %s39 = sphi 0, %s36
      %s40 = sphi 0, %s39
      %s56 = sphi 0, %s40
      %s64 = sphi 0, %s66
      %s67 = sphi 0, %s64
      %s68 = sphi 0, %s67
      %s84 = sphi 0, %s68
      %s92 = sphi 0, %s94
      %s95 = sphi 0, %s92
      %s96 = sphi 0, %s95
      %s112 = sphi 0, %s96
    $region4: #{tpu_custom_call.1} parent=1 // loop_header_branch
      %15 = sbr.rel (%p13) target = $region8
    $region5: #{tpu_custom_call.1} parent=1 // loop_body
      %s17 = ssub.s32 %s12, 1
      %s18 = ssub.s32 %s12, 2
      %s25 = sadd.s32 1, %s20
      %p26 = scmp.ge.s32.totalorder %s25, 2
      %s27 = scalar_select %p26, 0, %s25
      %s28 = sadd.s32 1, %s19
      %s29 = scalar_select %p26, %s28, %s19
      %p30 = scmp.ge.s32.totalorder %s29, 1
      %s31 = scalar_select %p30, 0, %s29
      %s32 = ssub.s32 %s20, %s27
      %s33 = ssub.s32 %s19, %s31
      %s34 = sor.u32 %s32, %s33
      %p35 = scmp.eq.s32.totalorder %s34, 0
      %s37 = sadd.s32 %s36, 1
      %s38 = scalar_select %p35, %s36, %s37
      %p41 = pneg %p35
      %p42 = scmp.eq.s32.totalorder %s12, 1
      %p43 = por %p41, %p42
      %p44 = scmp.ne.s32.totalorder %s36, %s39
      %p45 = scmp.eq.s32.totalorder %s12, 0
      %p46 = por %p44, %p45
      %p47 = scmp.ne.s32.totalorder %s36, %s39
      %p48 = scmp.eq.s32.totalorder %s17, 1
      %p49 = por %p47, %p48
      %p50 = scmp.ne.s32.totalorder %s39, %s40
      %p51 = scmp.eq.s32.totalorder %s17, 0
      %p52 = por %p50, %p51
      %p53 = scmp.ne.s32.totalorder %s39, %s40
      %p54 = scmp.eq.s32.totalorder %s18, 1
      %p55 = por %p53, %p54
      %p57 = scmp.ne.s32.totalorder %s40, %s56
      %p58 = scmp.eq.s32.totalorder %s18, 0
      %p59 = por %p57, %p58
      %s60 = ssub.s32 %s20, %s27
      %s61 = ssub.s32 %s19, %s31
      %s62 = sor.u32 %s60, %s61
      %p63 = scmp.eq.s32.totalorder %s62, 0
      %s65 = sadd.s32 %s64, 1
      %s66 = scalar_select %p63, %s64, %s65
      %p69 = pneg %p63
      %p70 = scmp.eq.s32.totalorder %s12, 1
      %p71 = por %p69, %p70
      %p72 = scmp.ne.s32.totalorder %s64, %s67
      %p73 = scmp.eq.s32.totalorder %s12, 0
      %p74 = por %p72, %p73
      %p75 = scmp.ne.s32.totalorder %s64, %s67
      %p76 = scmp.eq.s32.totalorder %s17, 1
      %p77 = por %p75, %p76
      %p78 = scmp.ne.s32.totalorder %s67, %s68
      %p79 = scmp.eq.s32.totalorder %s17, 0
      %p80 = por %p78, %p79
      %p81 = scmp.ne.s32.totalorder %s67, %s68
      %p82 = scmp.eq.s32.totalorder %s18, 1
      %p83 = por %p81, %p82
      %p85 = scmp.ne.s32.totalorder %s68, %s84
      %p86 = scmp.eq.s32.totalorder %s18, 0
      %p87 = por %p85, %p86
      %s88 = ssub.s32 %s20, %s27
      %s89 = ssub.s32 %s19, %s31
      %s90 = sor.u32 %s88, %s89
      %p91 = scmp.eq.s32.totalorder %s90, 0
      %s93 = sadd.s32 %s92, 1
      %s94 = scalar_select %p91, %s92, %s93
      %p97 = pneg %p91
      %p98 = scmp.eq.s32.totalorder %s12, 1
      %p99 = por %p97, %p98
      %p100 = scmp.ne.s32.totalorder %s92, %s95
      %p101 = scmp.eq.s32.totalorder %s12, 0
      %p102 = por %p100, %p101
      %p103 = scmp.ne.s32.totalorder %s92, %s95
      %p104 = scmp.eq.s32.totalorder %s17, 1
      %p105 = por %p103, %p104
      %p106 = scmp.ne.s32.totalorder %s95, %s96
      %p107 = scmp.eq.s32.totalorder %s17, 0
      %p108 = por %p106, %p107
      %p109 = scmp.ne.s32.totalorder %s95, %s96
      %p110 = scmp.eq.s32.totalorder %s18, 1
      %p111 = por %p109, %p110
      %p113 = scmp.ne.s32.totalorder %s96, %s112
      %p114 = scmp.eq.s32.totalorder %s18, 0
      %p115 = por %p113, %p114
      %p116 = scmp.le.s32.totalorder 1, %s12
      %p117 = scmp.lt.s32.totalorder %s12, 3
      %p118 = pnand %p116, %p117
      %p119 = pneg %p118
      // Predicated region
      $region9: #{tpu_custom_call.1} parent=5 // pred_check
        _
      $region10: #{tpu_custom_call.1} parent=5 // pred_check_branch
        %121 = sbr.rel (%p118) target = $region12
      $region11: #{tpu_custom_call.1} parent=5 // pred_region
        %s122 = ssub.s32 %s12, 1
      $region12: #{tpu_custom_call.1} parent=5 // pred_fallthru
        _
      %p123 = scmp.lt.s32.totalorder %s12, 2
      // Predicated region
      $region13: #{tpu_custom_call.1} parent=5 // pred_check
        %p124 = pneg %p123
      $region14: #{tpu_custom_call.1} parent=5 // pred_check_branch
        %126 = sbr.rel (%p124) target = $region16
      $region15: #{tpu_custom_call.1} parent=5 // pred_region
        // Predicated region
        $region17: #{tpu_custom_call.1} parent=15 // pred_check
          %p127 = pneg %p46
        $region18: #{tpu_custom_call.1} parent=15 // pred_check_branch
          %129 = sbr.rel (%p127) target = $region20
        $region19: #{tpu_custom_call.1} parent=15 // pred_region
          %s130 = sand.u32 %s36, 1
          %s131 = scalar_lea.sflag [#allocation3], %s130
          %s132 = sand.u32 %s36, 1
          %s133 = smul.addr %s132, 8
          %s134 = scalar_lea.vmem [#allocation2], %s133
          %s136 = ssub.s32 128, 128
          %137 = vsyncadd %s131, %s136
          %s138 = smul.addr %s19, 2
          %s139 = smul.addr %s20, 2
          %s140 = sadd.s32 %s138, %s139
          %s141 = smul.addr %s140, 64
          %s142 = scalar_lea.hbm %s0, %s141
          %s144 = sshll.u32 %s134, 4
          %s145 = int_to_ptr.vmem [resolvable:$true] %s144
          %147 = dma.hbm_to_vmem [thread:$0]  %s142, 128, %s145, %s131
        $region20: #{tpu_custom_call.1} parent=15 // pred_fallthru
          _
      $region16: #{tpu_custom_call.1} parent=5 // pred_fallthru
        _
      %p148 = scmp.le.s32.totalorder 1, %s12
      %p149 = scmp.lt.s32.totalorder %s12, 3
      %p150 = pnand %p148, %p149
      %p151 = pneg %p150
      // Predicated region
      $region21: #{tpu_custom_call.1} parent=5 // pred_check
        _
      $region22: #{tpu_custom_call.1} parent=5 // pred_check_branch
        %153 = sbr.rel (%p150) target = $region24
      $region23: #{tpu_custom_call.1} parent=5 // pred_region
        %s154 = ssub.s32 %s12, 1
        %s155 = sand.u32 %s39, 1
        %s156 = scalar_lea.sflag [#allocation3], %s155
        %s157 = sand.u32 %s39, 1
        %s158 = smul.addr %s157, 8
        %s159 = scalar_lea.vmem [#allocation2], %s158
        // Predicated region
        $region25: #{tpu_custom_call.1} parent=23 // pred_check
          %p160 = pneg %p52
        $region26: #{tpu_custom_call.1} parent=23 // pred_check_branch
          %162 = sbr.rel (%p160) target = $region28
        $region27: #{tpu_custom_call.1} parent=23 // pred_region
          %163 = dma.done %s156, 128
        $region28: #{tpu_custom_call.1} parent=23 // pred_fallthru
          _
        %s164 = sand.u32 %s39, 1
        %s165 = scalar_lea.sflag [#allocation3], %s164
        %s166 = sand.u32 %s39, 1
        %s167 = smul.addr %s166, 8
        %s168 = scalar_lea.vmem [#allocation2], %s167
        %p169 = pneg %p52
        %p170 = pneg %p49
        %p171 = pneg %p80
        %p172 = pneg %p77
        %p173 = scmp.lt.s32.totalorder %s22, 1
        %s174 = scalar_select %p173, %s22, 1
        %p175 = scmp.lt.s32.totalorder %s21, 0
        %s176 = scalar_select %p175, %s21, 0
        %s177 = sadd.s32 %s176, %s174
        %s178 = smul.addr %s177, 4
        %s179 = scalar_lea.vmem %s1, %s178
        %p180 = pneg %p108
        %p181 = pneg %p105
        %p182 = scmp.lt.s32.totalorder %s22, 1
        %s183 = scalar_select %p182, %s22, 1
        %p184 = scmp.lt.s32.totalorder %s21, 0
        %s185 = scalar_select %p184, %s21, 0
        %s186 = sadd.s32 %s185, %s183
        %s187 = smul.addr %s186, 4
        %s188 = scalar_lea.vmem %s2, %s187
        %p189 = scmp.lt.s32.totalorder %s22, 1
        %s190 = scalar_select %p189, %s22, 1
        %p191 = scmp.lt.s32.totalorder %s21, 0
        %s192 = scalar_select %p191, %s21, 0
        %s193 = sadd.s32 %s192, %s190
        %s194 = smul.addr %s193, 4
        %s195 = scalar_lea.vmem %s1, %s194
        %p196 = scmp.lt.s32.totalorder %s22, 1
        %s197 = scalar_select %p196, %s22, 1
        %p198 = scmp.lt.s32.totalorder %s21, 0
        %s199 = scalar_select %p198, %s21, 0
        %s200 = sadd.s32 %s199, %s197
        %s201 = smul.addr %s200, 4
        %s202 = scalar_lea.vmem %s2, %s201
        %v203 = vld [vmem:[%s159] sm:$0xff]
        %v205 = vcombine.high %v203, %v203
        %vm207 = vcmask 1043456
        %v208 = vsel %vm207, %v203, inf
        %v209 = vsel %vm207, %v205, inf
        %v210 = vmin.f32 %v208, %v209
        %211 = vmin.xlane.f32.xlu0 %v210
        %v212 = vpop.xlane.xlu0 %211
        %vm213 = vcmask 3072
        %214 = vst.msk [vmem:[%s195] sm:$0xf] %vm213, %v212
        %v215 = vsel %vm207, %v203, -inf
        %v216 = vsel %vm207, %v205, -inf
        %v217 = vmax.f32 %v215, %v216
        %218 = vmax.xlane.f32.xlu0 %v217
        %v219 = vpop.xlane.xlu0 %218
        %220 = vst.msk [vmem:[%s202] sm:$0xf] %vm213, %v219
        %p221 = scmp.lt.s32.totalorder %s22, 1
        %s222 = scalar_select %p221, %s22, 1
        %p223 = scmp.lt.s32.totalorder %s21, 0
        %s224 = scalar_select %p223, %s21, 0
        %s225 = sadd.s32 %s224, %s222
        %s226 = smul.addr %s225, 4
        %s227 = scalar_lea.vmem %s1, %s226
        %p228 = scmp.lt.s32.totalorder %s22, 1
        %s229 = scalar_select %p228, %s22, 1
        %p230 = scmp.lt.s32.totalorder %s21, 0
        %s231 = scalar_select %p230, %s21, 0
        %s232 = sadd.s32 %s231, %s229
        %s233 = smul.addr %s232, 4
        %s234 = scalar_lea.vmem %s2, %s233
        // Predicated region
        $region29: #{tpu_custom_call.1} parent=23 // pred_check
          %p235 = pneg %p77
        $region30: #{tpu_custom_call.1} parent=23 // pred_check_branch
          %237 = sbr.rel (%p235) target = $region32
        $region31: #{tpu_custom_call.1} parent=23 // pred_region
          _
        $region32: #{tpu_custom_call.1} parent=23 // pred_fallthru
          _
        // Predicated region
        $region33: #{tpu_custom_call.1} parent=23 // pred_check
          %p238 = pneg %p105
        $region34: #{tpu_custom_call.1} parent=23 // pred_check_branch
          %240 = sbr.rel (%p238) target = $region36
        $region35: #{tpu_custom_call.1} parent=23 // pred_region
          _
        $region36: #{tpu_custom_call.1} parent=23 // pred_fallthru
          _
      $region24: #{tpu_custom_call.1} parent=5 // pred_fallthru
        _
      %p241 = scmp.le.s32.totalorder 2, %s12
      // Predicated region
      $region37: #{tpu_custom_call.1} parent=5 // pred_check
        %p242 = pneg %p241
      $region38: #{tpu_custom_call.1} parent=5 // pred_check_branch
        %244 = sbr.rel (%p242) target = $region40
      $region39: #{tpu_custom_call.1} parent=5 // pred_region
        %s245 = ssub.s32 %s12, 2
        // Predicated region
        $region41: #{tpu_custom_call.1} parent=39 // pred_check
          %p246 = pneg %p83
        $region42: #{tpu_custom_call.1} parent=39 // pred_check_branch
          %248 = sbr.rel (%p246) target = $region44
        $region43: #{tpu_custom_call.1} parent=39 // pred_region
          %p249 = scmp.lt.s32.totalorder %s24, 1
          %s250 = scalar_select %p249, %s24, 1
          %p251 = scmp.lt.s32.totalorder %s23, 0
          %s252 = scalar_select %p251, %s23, 0
          %s253 = sadd.s32 %s252, %s250
          %s254 = smul.addr %s253, 4
          %s255 = scalar_lea.vmem %s1, %s254
        $region44: #{tpu_custom_call.1} parent=39 // pred_fallthru
          _
        // Predicated region
        $region45: #{tpu_custom_call.1} parent=39 // pred_check
          %p256 = pneg %p111
        $region46: #{tpu_custom_call.1} parent=39 // pred_check_branch
          %258 = sbr.rel (%p256) target = $region48
        $region47: #{tpu_custom_call.1} parent=39 // pred_region
          %p259 = scmp.lt.s32.totalorder %s24, 1
          %s260 = scalar_select %p259, %s24, 1
          %p261 = scmp.lt.s32.totalorder %s23, 0
          %s262 = scalar_select %p261, %s23, 0
          %s263 = sadd.s32 %s262, %s260
          %s264 = smul.addr %s263, 4
          %s265 = scalar_lea.vmem %s2, %s264
        $region48: #{tpu_custom_call.1} parent=39 // pred_fallthru
          _
      $region40: #{tpu_custom_call.1} parent=5 // pred_fallthru
        _
    $region6: #{tpu_custom_call.1} parent=1 // loop_footer
      %s16 = sadd.s32 1, %s12
    $region7: #{tpu_custom_call.1} parent=1 // loop_footer_branch
      %11 = sbr.rel target = $region3
    $region8: #{tpu_custom_call.1} parent=1 // loop_exit
      _
    %266 = vsyncpa [#allocation3], 1
    %s267 = scalar_lea.sflag [#allocation3], 1
    %268 = vsyncpa %s267, 1

</llo_original>
